<compile_context>
chip_gen: v7x
topology: tpu7x:2x2x1
jax: 0.10.0
libtpu: 0.0.40
codegen_flags: <defaults>
</compile_context>

<pallas_src>
import jax
import jax.numpy as jnp
from jax.experimental import pallas as pl
from jax.experimental.pallas import tpu as pltpu


def _mlp_kernel_accum_out(x_ref, w_ref, b_ref, o_ref):
    """f32 output: accumulate directly into the resident output tile (no scratch)."""
    k = pl.program_id(2)

    @pl.when(k == 0)
    def _():
        o_ref[...] = jnp.zeros_like(o_ref)

    # y[m, n] += sum_k x[m, k] * w[k, n]  (bf16 operands, f32 accumulation on MXU).
    o_ref[...] += jnp.dot(x_ref[...], w_ref[...], preferred_element_type=jnp.float32)

    @pl.when(k == pl.num_programs(2) - 1)
    def _():
        o_ref[...] = jnp.tanh(o_ref[...] + b_ref[...])   # bias add (VPU) + tanh (EUP)


def _mlp_kernel_scratch_acc(x_ref, w_ref, b_ref, o_ref, acc_ref):
    """Low-precision output: f32 scratch accumulator, cast only in the epilogue."""
    k = pl.program_id(2)

    @pl.when(k == 0)
    def _():
        acc_ref[...] = jnp.zeros_like(acc_ref)

    acc_ref[...] += jnp.dot(x_ref[...], w_ref[...], preferred_element_type=jnp.float32)

    @pl.when(k == pl.num_programs(2) - 1)
    def _():
        o_ref[...] = jnp.tanh(acc_ref[...] + b_ref[...]).astype(o_ref.dtype)


def _round_up(a, b):
    return (a + b - 1) // b * b


def _pick_tile(dim, max_tile, align):
    """Largest multiple of `align` that divides round_up(dim, align) and is <= max_tile."""
    aligned = _round_up(dim, align)
    units = aligned // align
    best = 1
    d = 1
    while d * d <= units:
        if units % d == 0:
            for cand in (d, units // d):
                if cand * align <= max_tile and cand > best:
                    best = cand
        d += 1
    return best * align, aligned


def mlp_layer(features, weight, bias, *, tm=256, tn=512, tk=2048,
              compute_dtype=jnp.bfloat16):
    """features: [B, H_in]; weight: [H_out, H_in] (PyTorch nn.Linear); bias: [H_out]."""
    M, K = features.shape
    N, K2 = weight.shape
    assert K == K2, "weight inner dim must match features hidden dim"
    assert bias.shape == (N,)
    out_dtype = features.dtype

    # M tile: clamp to the problem size; bf16 tiles pack 16 rows per sublane group.
    m_align = 16 if jnp.dtype(compute_dtype).itemsize < 4 else 8
    tm = min(tm, _round_up(M, m_align))
    Mp = _round_up(M, tm)
    # N/K tiles: divisor-aware so padding never exceeds 128-lane alignment.
    tn, Np = _pick_tile(N, tn, 128)
    tk, Kp = _pick_tile(K, tk, 128)

    # v7x has two TensorCores: if both parallel axes collapsed to one tile,
    # split N so the "parallel" semantics can shard across cores.
    if Mp == tm and Np == tn and Np >= 256 and (Np // 128) % 2 == 0:
        tn = Np // 2

    # Conditional pad + cast (fused into a single copy under jit; skipped if no-op).
    x_p = features
    if (Mp, Kp) != (M, K):
        x_p = jnp.pad(x_p, ((0, Mp - M), (0, Kp - K)))
    if x_p.dtype != compute_dtype:
        x_p = x_p.astype(compute_dtype)

    # Present W as [K, N] so the MXU gets its native RHS orientation (no per-step
    # XLU transpose). The transpose rides along with the bf16 cast / pad copy.
    w_p = weight.T
    if (Kp, Np) != (K, N):
        w_p = jnp.pad(w_p, ((0, Kp - K), (0, Np - N)))
    if w_p.dtype != compute_dtype:
        w_p = w_p.astype(compute_dtype)

    b_p = bias
    if Np != N:
        b_p = jnp.pad(b_p, (0, Np - N))
    b_p = b_p.astype(jnp.float32).reshape(1, Np)   # epilogue stays f32

    grid = (Mp // tm, Np // tn, Kp // tk)
    n_i, n_j, _ = grid

    c_item = jnp.dtype(compute_dtype).itemsize
    o_item = jnp.dtype(out_dtype).itemsize
    cost = pl.CostEstimate(
        flops=2 * Mp * Np * Kp,
        transcendentals=Mp * Np,
        bytes_accessed=(Mp * Kp * c_item * n_j      # x re-read once per N tile
                        + Kp * Np * c_item * n_i    # W re-read once per M tile
                        + Np * 4 * n_i              # bias
                        + Mp * Np * o_item),        # output written once
    )

    if out_dtype == jnp.float32:
        kernel = _mlp_kernel_accum_out
        scratch = []
    else:
        kernel = _mlp_kernel_scratch_acc
        scratch = [pltpu.VMEM((tm, tn), jnp.float32)]

    out = pl.pallas_call(
        kernel,
        out_shape=jax.ShapeDtypeStruct((Mp, Np), out_dtype),
        grid_spec=pltpu.PrefetchScalarGridSpec(
            num_scalar_prefetch=0,
            grid=grid,
            in_specs=[
                pl.BlockSpec((tm, tk), lambda i, j, k: (i, k)),   # x tile  [tm, tk]
                # TODO(synk): if xprof on v7x still shows exposed weight DMA at tiny M,
                # add pipeline_mode=pl.Buffered(3) to this spec (extra VMEM vs 64 MiB cap).
                pl.BlockSpec((tk, tn), lambda i, j, k: (k, j)),   # W tile  [tk, tn]
                pl.BlockSpec((1, tn), lambda i, j, k: (0, j)),    # bias    [1,  tn]
            ],
            out_specs=pl.BlockSpec((tm, tn), lambda i, j, k: (i, j)),
            scratch_shapes=scratch,
        ),
        compiler_params=pltpu.CompilerParams(
            dimension_semantics=("parallel", "parallel", "arbitrary"),
            vmem_limit_bytes=32 * 1024 * 1024,   # ~7 MiB worst-case working set; safe on v5e/v6e/v7x
        ),
        cost_estimate=cost,
    )(x_p, w_p, b_p)

    return out[:M, :N]


if __name__ == "__main__":
    key = jax.random.PRNGKey(0)
    k1, k2, k3 = jax.random.split(key, 3)
    mlp = jax.jit(mlp_layer)

    # Small shapes consistent with the module (batch=8, hidden=32).
    B, H = 8, 32
    features = jax.random.normal(k1, (B, H), dtype=jnp.float32)
    weight = jax.random.normal(k2, (H, H), dtype=jnp.float32) * 0.05
    bias = jax.random.normal(k3, (H,), dtype=jnp.float32) * 0.01

    out = mlp(features, weight, bias)
    jax.block_until_ready(out)
    ref = jnp.tanh(features @ weight.T + bias)
    assert out.shape == (B, H)
    # bf16 MXU compute with f32 accumulation vs f32 reference.
    assert jnp.allclose(out, ref, atol=1e-2, rtol=1e-2)

    # Non-square / multi-tile configuration (exercises padding + N split).
    B2, Hin, Hout = 24, 160, 192
    f2 = jax.random.normal(k1, (B2, Hin), dtype=jnp.float32)
    w2 = jax.random.normal(k2, (Hout, Hin), dtype=jnp.float32) * 0.02
    b2 = jax.random.normal(k3, (Hout,), dtype=jnp.float32) * 0.01
    out2 = mlp(f2, w2, b2)
    jax.block_until_ready(out2)
    ref2 = jnp.tanh(f2 @ w2.T + b2)
    assert out2.shape == (B2, Hout)
    assert jnp.allclose(out2, ref2, atol=1e-2, rtol=1e-2)

    # bf16 inputs/outputs (exercises the scratch-accumulator epilogue path).
    f3, w3, b3 = f2.astype(jnp.bfloat16), w2.astype(jnp.bfloat16), b2.astype(jnp.bfloat16)
    out3 = mlp(f3, w3, b3)
    jax.block_until_ready(out3)
    ref3 = jnp.tanh(f3.astype(jnp.float32) @ w3.astype(jnp.float32).T
                    + b3.astype(jnp.float32))
    assert out3.shape == (B2, Hout) and out3.dtype == jnp.bfloat16
    assert jnp.allclose(out3.astype(jnp.float32), ref3, atol=2e-2, rtol=2e-2)

    print("KERNEL_OK")
</pallas_src>

<mosaic_0001>
module attributes {stable_mosaic.version = 11 : i64} {
  func.func @_mlp_kernel_accum_out(%arg0: i32, %arg1: i32, %arg2: i32, %arg3: memref<16x128xbf16, #tpu.memory_space<vmem>>, %arg4: memref<128x128xbf16, #tpu.memory_space<vmem>>, %arg5: memref<1x128xf32, #tpu.memory_space<vmem>>, %arg6: memref<16x128xf32, #tpu.memory_space<vmem>>) attributes {dimension_semantics = [#tpu.dimension_semantics<parallel>, #tpu.dimension_semantics<parallel>, #tpu.dimension_semantics<arbitrary>], iteration_bounds = array<i64: 1, 1, 1>, scalar_prefetch = 0 : i64, scratch_operands = 0 : i64, tpu.core_type = #tpu.core_type<tc>, window_params = [{transform_indices = @transform_0, window_bounds = array<i64: 16, 128>}, {transform_indices = @transform_1, window_bounds = array<i64: 128, 128>}, {transform_indices = @transform_2, window_bounds = array<i64: 1, 128>}, {transform_indices = @transform_3, window_bounds = array<i64: 16, 128>}]} {
    %c0_i32 = arith.constant 0 : i32
    %0 = arith.cmpi eq, %arg2, %c0_i32 : i32
    %1 = arith.extui %0 : i1 to i32
    %c0_i32_0 = arith.constant 0 : i32
    %2 = arith.cmpi ne, %1, %c0_i32_0 : i32
    scf.if %2 {
      %cst_10 = arith.constant 0.000000e+00 : f32
      %12 = vector.broadcast %cst_10 : f32 to vector<16x128xf32>
      %c0_11 = arith.constant 0 : index
      %c0_12 = arith.constant 0 : index
      %13 = vector.load %arg6[%c0_11, %c0_12] : memref<16x128xf32, #tpu.memory_space<vmem>>, vector<16x128xf32>
      tpu.vector_store %arg6[%c0_11, %c0_12], %12 {strides = array<i32>} : memref<16x128xf32, #tpu.memory_space<vmem>>, vector<16x128xf32>,
    } else {
    }
    %c0 = arith.constant 0 : index
    %c0_1 = arith.constant 0 : index
    %3 = vector.load %arg6[%c0, %c0_1] : memref<16x128xf32, #tpu.memory_space<vmem>>, vector<16x128xf32>
    %c0_2 = arith.constant 0 : index
    %c0_3 = arith.constant 0 : index
    %4 = vector.load %arg3[%c0_2, %c0_3] : memref<16x128xbf16, #tpu.memory_space<vmem>>, vector<16x128xbf16>
    %c0_4 = arith.constant 0 : index
    %c0_5 = arith.constant 0 : index
    %5 = vector.load %arg4[%c0_4, %c0_5] : memref<128x128xbf16, #tpu.memory_space<vmem>>, vector<128x128xbf16>
    %cst = arith.constant dense<0.000000e+00> : vector<16x128xf32>
    %6 = tpu.matmul %4, %5, %cst {dimension_numbers = #tpu.dot_dimension_numbers<[1], [0], [0], [1], [0, 0, 1, 1], [], []>} : vector<16x128xbf16>, vector<128x128xbf16>, vector<16x128xf32> -> vector<16x128xf32>
    %7 = arith.addf %3, %6 : vector<16x128xf32>
    %c0_6 = arith.constant 0 : index
    %c0_7 = arith.constant 0 : index
    %8 = vector.load %arg6[%c0_6, %c0_7] : memref<16x128xf32, #tpu.memory_space<vmem>>, vector<16x128xf32>
    tpu.vector_store %arg6[%c0_6, %c0_7], %7 {strides = array<i32>} : memref<16x128xf32, #tpu.memory_space<vmem>>, vector<16x128xf32>,
    %c0_i32_8 = arith.constant 0 : i32
    %9 = arith.cmpi eq, %arg2, %c0_i32_8 : i32
    %10 = arith.extui %9 : i1 to i32
    %c0_i32_9 = arith.constant 0 : i32
    %11 = arith.cmpi ne, %10, %c0_i32_9 : i32
    scf.if %11 {
      %c0_10 = arith.constant 0 : index
      %c0_11 = arith.constant 0 : index
      %12 = vector.load %arg6[%c0_10, %c0_11] : memref<16x128xf32, #tpu.memory_space<vmem>>, vector<16x128xf32>
      %c0_12 = arith.constant 0 : index
      %c0_13 = arith.constant 0 : index
      %13 = vector.load %arg5[%c0_12, %c0_13] : memref<1x128xf32, #tpu.memory_space<vmem>>, vector<1x128xf32>
      %14 = vector.broadcast %13 : vector<1x128xf32> to vector<16x128xf32>
      %15 = arith.addf %12, %14 : vector<16x128xf32>
      %16 = math.tanh %15 : vector<16x128xf32>
      %c0_14 = arith.constant 0 : index
      %c0_15 = arith.constant 0 : index
      %17 = vector.load %arg6[%c0_14, %c0_15] : memref<16x128xf32, #tpu.memory_space<vmem>>, vector<16x128xf32>
      tpu.vector_store %arg6[%c0_14, %c0_15], %16 {strides = array<i32>} : memref<16x128xf32, #tpu.memory_space<vmem>>, vector<16x128xf32>,
    } else {
    }
    return
  }
  func.func @transform_0(%arg0: i32, %arg1: i32, %arg2: i32) -> (i32, i32) {
    %c0_i32 = arith.constant 0 : i32
    return %arg0, %arg2 : i32, i32
  }
  func.func @transform_1(%arg0: i32, %arg1: i32, %arg2: i32) -> (i32, i32) {
    %c0_i32 = arith.constant 0 : i32
    return %arg2, %arg1 : i32, i32
  }
  func.func @transform_2(%arg0: i32, %arg1: i32, %arg2: i32) -> (i32, i32) {
    %c0_i32 = arith.constant 0 : i32
    %c0_i32_0 = arith.constant 0 : i32
    return %c0_i32, %arg1 : i32, i32
  }
  func.func @transform_3(%arg0: i32, %arg1: i32, %arg2: i32) -> (i32, i32) {
    %c0_i32 = arith.constant 0 : i32
    return %arg0, %arg1 : i32, i32
  }
}

</mosaic_0001>

<llo_original>
// kernel: mlp_layer.1
$region0: #{mlp_layer.1}
  #allocation0 [shape = 'u32[]', space=smem, size = 0x4, offset = 0x4, fixed_abs, tag = 'smem constant byte address 0x4 - core index']
  #allocation1 [shape = 'u32[144,128]{1,0:T(1,128)}', space=vmem, size = 0x12000, scoped, tag = 'internal scratch']
  %s0 = inlined_call_operand.vmem [shape: bf16[16,128], index: 0, kind: input, shape index: {}]
  %s1 = inlined_call_operand.vmem [shape: bf16[128,128], index: 1, kind: input, shape index: {}]
  %s2 = inlined_call_operand.vmem [shape: f32[1,128], index: 2, kind: input, shape index: {}]
  %s3 = inlined_call_operand.vmem [shape: f32[16,128], index: 3, kind: output, shape index: {}]
  %s4 = sld [smem:[#allocation0]]
  $region30: #{mlp_layer.1} parent=0
    _
  %s6 = ssub.s32 1, %s4
  %s7 = scalar_select 0, %s6, %s4
  // Predicated region
  $region2: #{mlp_layer.1} parent=0 // pred_check
    _
  $region3: #{mlp_layer.1} parent=0 // pred_check_branch
    %9 = sbr.rel (0) target = $region5
  $region4: #{mlp_layer.1} parent=0 // pred_region
    _
  $region5: #{mlp_layer.1} parent=0 // pred_fallthru
    _
  // Predicated region
  $region6: #{mlp_layer.1} parent=0 // pred_check
    _
  $region7: #{mlp_layer.1} parent=0 // pred_check_branch
    %11 = sbr.rel (0) target = $region9
  $region8: #{mlp_layer.1} parent=0 // pred_region
    _
  $region9: #{mlp_layer.1} parent=0 // pred_fallthru
    _
  // Predicated region
  $region10: #{mlp_layer.1} parent=0 // pred_check
    _
  $region11: #{mlp_layer.1} parent=0 // pred_check_branch
    %13 = sbr.rel (0) target = $region13
  $region12: #{mlp_layer.1} parent=0 // pred_region
    _
  $region13: #{mlp_layer.1} parent=0 // pred_fallthru
    _
  %p15 = scmp.eq.s32.totalorder 0, 0
  // Predicated region
  $region14: #{mlp_layer.1} parent=0 // pred_check
    %p16 = pneg %p15
  $region15: #{mlp_layer.1} parent=0 // pred_check_branch
    %18 = sbr.rel (%p16) target = $region17
  $region16: #{mlp_layer.1} parent=0 // pred_region
    %19 = vst [vmem:[%s3] sm:$0xff] 0.0
    %20 = vst [vmem:[%s3 + $0x8] sm:$0xff] 0.0
  $region17: #{mlp_layer.1} parent=0 // pred_fallthru
    _
  %v21 = vld [vmem:[%s3] sm:$0xff]
  %v22 = vld [vmem:[%s3 + $0x8] sm:$0xff]
  %v23 = vld [vmem:[%s0] sm:$0xf]
  %v24 = vld [vmem:[%s0 + $0x4] sm:$0xf]
  %v25 = vld [vmem:[%s1] sm:$0xf]
  %v26 = vld [vmem:[%s1 + $0x4] sm:$0xf]
  %v27 = vld [vmem:[%s1 + $0x8] sm:$0xf]
  %v28 = vld [vmem:[%s1 + $0xc] sm:$0xf]
  %v29 = vld [vmem:[%s1 + $0x10] sm:$0xf]
  %v30 = vld [vmem:[%s1 + $0x14] sm:$0xf]
  %v31 = vld [vmem:[%s1 + $0x18] sm:$0xf]
  %v32 = vld [vmem:[%s1 + $0x1c] sm:$0xf]
  %v33 = vld [vmem:[%s1 + $0x20] sm:$0xf]
  %v34 = vld [vmem:[%s1 + $0x24] sm:$0xf]
  %v35 = vld [vmem:[%s1 + $0x28] sm:$0xf]
  %v36 = vld [vmem:[%s1 + $0x2c] sm:$0xf]
  %v37 = vld [vmem:[%s1 + $0x30] sm:$0xf]
  %v38 = vld [vmem:[%s1 + $0x34] sm:$0xf]
  %v39 = vld [vmem:[%s1 + $0x38] sm:$0xf]
  %v40 = vld [vmem:[%s1 + $0x3c] sm:$0xf]
  %v43 = vunpack.c.l.b16 %v23
  %v44 = vunpack.c.l.b16 %v24
  %v45 = vpack.c.b16 %v44, %v43
  %v63 = vunpack.c.l.b16 %v25
  %v64 = vunpack.c.l.b16 %v26
  %v65 = vunpack.c.l.b16 %v27
  %v66 = vunpack.c.l.b16 %v28
  %v67 = vunpack.c.l.b16 %v29
  %v68 = vunpack.c.l.b16 %v30
  %v69 = vunpack.c.l.b16 %v31
  %v70 = vunpack.c.l.b16 %v32
  %v71 = vunpack.c.l.b16 %v33
  %v72 = vunpack.c.l.b16 %v34
  %v73 = vunpack.c.l.b16 %v35
  %v74 = vunpack.c.l.b16 %v36
  %v75 = vunpack.c.l.b16 %v37
  %v76 = vunpack.c.l.b16 %v38
  %v77 = vunpack.c.l.b16 %v39
  %v78 = vunpack.c.l.b16 %v40
  %v79 = vpack.c.b16 %v64, %v63
  %v80 = vpack.c.b16 %v66, %v65
  %v81 = vpack.c.b16 %v68, %v67
  %v82 = vpack.c.b16 %v70, %v69
  %v83 = vpack.c.b16 %v72, %v71
  %v84 = vpack.c.b16 %v74, %v73
  %v85 = vpack.c.b16 %v76, %v75
  %v86 = vpack.c.b16 %v78, %v77
  %95 = vmatprep.subr.bf16.mxu0 0
  %96 = vmatpush1.bf16.msra.mxu0 %v79
  %97 = vmatprep.subr.bf16.mxu0 0
  %98 = vmatpush1.bf16.msra.mxu0 %v80
  %99 = vmatprep.subr.bf16.mxu0 0
  %100 = vmatpush1.bf16.msra.mxu0 %v81
  %101 = vmatprep.subr.bf16.mxu0 0
  %102 = vmatpush1.bf16.msra.mxu0 %v82
  %103 = vmatprep.subr.bf16.mxu0 0
  %104 = vmatpush1.bf16.msra.mxu0 %v83
  %105 = vmatprep.subr.bf16.mxu0 0
  %106 = vmatpush1.bf16.msra.mxu0 %v84
  %107 = vmatprep.subr.bf16.mxu0 0
  %108 = vmatpush1.bf16.msra.mxu0 %v85
  %109 = vmatprep.subr.bf16.mxu0 0
  %110 = vmatpush1.bf16.msra.mxu0 %v86
  %111 = vmatprep.subr.bf16.mxu0 0
  %112 = vmatpush1.bf16.msra.mxu0 0
  %113 = vmatprep.subr.bf16.mxu0 0
  %114 = vmatpush1.bf16.msra.mxu0 0
  %115 = vmatprep.subr.bf16.mxu0 0
  %116 = vmatpush1.bf16.msra.mxu0 0
  %117 = vmatprep.subr.bf16.mxu0 0
  %118 = vmatpush1.bf16.msra.mxu0 0
  %119 = vmatprep.subr.bf16.mxu0 0
  %120 = vmatpush1.bf16.msra.mxu0 0
  %121 = vmatprep.subr.bf16.mxu0 0
  %122 = vmatpush1.bf16.msra.mxu0 0
  %123 = vmatprep.subr.bf16.mxu0 0
  %124 = vmatpush1.bf16.msra.mxu0 0
  %125 = vmatprep.subr.bf16.mxu0 0
  %126 = vmatpush1.bf16.msra.mxu0 0
  %127 = vmatprep.mubr.bf16.mxu0 0
  %128 = vmatmul.mubr.bf16.gmra.mrb[0].mxu0 %v45
  %v129 = vpop.f32.mrb[0].mxu0
  %v130 = vadd.f32 0.0, %v129
  %v131 = vpop.f32.mrb[0].mxu0
  %v132 = vpop.f32.mrb[0].mxu0
  %v133 = vadd.f32 0.0, %v132
  %v134 = vpop.f32.mrb[0].mxu0
  %135 = vdwg.mxu0
  %v136 = vadd.f32 %v21, %v130
  %v137 = vadd.f32 %v22, %v133
  %138 = vst [vmem:[%s3] sm:$0xff] %v136
  %139 = vst [vmem:[%s3 + $0x8] sm:$0xff] %v137
  // Predicated region
  $region18: #{mlp_layer.1} parent=0 // pred_check
    %p140 = pneg %p15
  $region19: #{mlp_layer.1} parent=0 // pred_check_branch
    %142 = sbr.rel (%p140) target = $region21
  $region20: #{mlp_layer.1} parent=0 // pred_region
    %v143 = vld [vmem:[%s3] sm:$0xff]
    %v144 = vld [vmem:[%s3 + $0x8] sm:$0xff]
    %v145 = vld [vmem:[%s2] sm:$0x1]
    %v147 = vlaneseq
    %v148 = vshrl.u32 %v147, 7
    %v149 = vsub.s32 0, %v148
    %v150 = vrot.slane %v145, %v149
    %v152 = vadd.f32 %v143, %v150
    %v153 = vadd.f32 %v144, %v150
    %v154 = vtanh.pop %v152
    %v155 = vtanh.pop %v153
    %156 = vst [vmem:[%s3] sm:$0xff] %v154
    %157 = vst [vmem:[%s3 + $0x8] sm:$0xff] %v155
  $region21: #{mlp_layer.1} parent=0 // pred_fallthru
    _
  // Predicated region
  $region22: #{mlp_layer.1} parent=0 // pred_check
    _
  $region23: #{mlp_layer.1} parent=0 // pred_check_branch
    %159 = sbr.rel (0) target = $region25
  $region24: #{mlp_layer.1} parent=0 // pred_region
    _
  $region25: #{mlp_layer.1} parent=0 // pred_fallthru
    _
  // Predicated region
  $region26: #{mlp_layer.1} parent=0 // pred_check
    _
  $region27: #{mlp_layer.1} parent=0 // pred_check_branch
    %161 = sbr.rel (0) target = $region29
  $region28: #{mlp_layer.1} parent=0 // pred_region
    _
  $region29: #{mlp_layer.1} parent=0 // pred_fallthru
    _

</llo_original>
